<compile_context>
chip_gen: v7x
topology: tpu7x:2x2x1
jax: 0.10.0
libtpu: 0.0.40
codegen_flags: <defaults>
</compile_context>

<pallas_src>
import jax
import jax.numpy as jnp
from jax.experimental import pallas as pl
from jax.experimental.pallas import tpu as pltpu

BN_EPS = 1e-5  # PyTorch nn.BatchNorm1d default eps


def _round_up(x, m):
    return ((x + m - 1) // m) * m


def make_config(cont_cols, emb_sizes, fc_sizes):
    """Static layout metadata shared by packer / kernel / wrapper."""
    num_embs = [int(n) for n, _ in emb_sizes]
    emb_dims = [int(d) for _, d in emb_sizes]
    n_cat = len(emb_sizes)
    n_oh = sum(num_embs)
    oh_offsets, off = [], 0
    for n in num_embs:
        oh_offsets.append(off)
        off += n
    n_cont = len(cont_cols)
    hidden_1 = sum(emb_dims) + n_cont
    sizes = [hidden_1] + [int(s) for s in fc_sizes]
    L = len(fc_sizes)
    lane_dense_out = sizes[-1] == 1  # final fan_out == 1 -> store as (1, B)

    if lane_dense_out:
        # last layer kept in torch (f_out, f_in) layout for the transposed dot
        w_rows = [sizes[l] for l in range(L - 1)] + [1]
        w_cols = [sizes[l + 1] for l in range(L - 1)] + [sizes[L - 1]]
    else:
        w_rows = [sizes[l] for l in range(L)]
        w_cols = [sizes[l + 1] for l in range(L)]
    w_offs, off = [], 0
    for r in w_rows:                      # 8-align each layer's rows (sublanes)
        w_offs.append(off)
        off = _round_up(off + r, 8)
    w_total = w_offs[-1] + w_rows[-1]

    cont_row_off = _round_up(n_oh, 8)     # 8-aligned start of the identity block
    return dict(
        num_embs=num_embs, emb_dims=emb_dims, n_cat=n_cat, n_oh=n_oh,
        oh_offsets=oh_offsets, n_cont=n_cont, hidden_1=hidden_1, sizes=sizes,
        L=L, lane_dense_out=lane_dense_out, w_rows=w_rows, w_cols=w_cols,
        w_offs=w_offs, w_total=w_total, f_max=max(sizes),
        cont_row_off=cont_row_off, proj_rows=cont_row_off + n_cont,
    )


def init_params(key, cfg):
    """PyTorch-shaped parameters with matching default init."""
    params = {"emb_tables": [], "layers": []}
    for n, d in zip(cfg["num_embs"], cfg["emb_dims"]):
        key, sub = jax.random.split(key)
        params["emb_tables"].append(jax.random.normal(sub, (n, d), jnp.float32))
    for l in range(cfg["L"]):
        f_in, f_out = cfg["sizes"][l], cfg["sizes"][l + 1]
        key, kw, kb = jax.random.split(key, 3)
        bound = 1.0 / (f_in ** 0.5)
        params["layers"].append({
            "w": jax.random.uniform(kw, (f_out, f_in), minval=-bound,
                                    maxval=bound, dtype=jnp.float32),
            "bias": jax.random.uniform(kb, (f_out,), minval=-bound,
                                       maxval=bound, dtype=jnp.float32),
            "gamma": jnp.ones((f_in,), jnp.float32),
            "beta": jnp.zeros((f_in,), jnp.float32),
        })
    return params


def pack_params(params, cfg):
    """One-time packing: 3 slabs instead of 11 tiny parameter arrays."""
    # Projection slab: [one-hot rows -> embedding tables | identity -> cont].
    proj = jnp.zeros((cfg["proj_rows"], cfg["hidden_1"]), jnp.float32)
    col = 0
    for i, tab in enumerate(params["emb_tables"]):
        r, n, d = cfg["oh_offsets"][i], cfg["num_embs"][i], cfg["emb_dims"][i]
        proj = proj.at[r:r + n, col:col + d].set(tab)
        col += d
    proj = proj.at[cfg["cont_row_off"]:cfg["cont_row_off"] + cfg["n_cont"],
                   col:col + cfg["n_cont"]].set(
                       jnp.eye(cfg["n_cont"], dtype=jnp.float32))

    # gamma / beta / bias slab: 3 rows per layer.
    vecs = jnp.zeros((3 * cfg["L"], cfg["f_max"]), jnp.float32)
    # Weight slab: per-layer blocks at 8-aligned row offsets.
    wpk = jnp.zeros((cfg["w_total"], cfg["f_max"]), jnp.float32)
    for l, lp in enumerate(params["layers"]):
        f_in, f_out = cfg["sizes"][l], cfg["sizes"][l + 1]
        vecs = vecs.at[3 * l, :f_in].set(lp["gamma"])
        vecs = vecs.at[3 * l + 1, :f_in].set(lp["beta"])
        vecs = vecs.at[3 * l + 2, :f_out].set(lp["bias"])
        if l == cfg["L"] - 1 and cfg["lane_dense_out"]:
            wl = lp["w"]          # (1, f_in) torch layout for transposed dot
        else:
            wl = lp["w"].T        # (f_in, f_out) canonical MXU orientation
        off = cfg["w_offs"][l]
        wpk = wpk.at[off:off + cfg["w_rows"][l], 0:cfg["w_cols"][l]].set(wl)
    return {"proj": proj, "vecs": vecs, "w": wpk}


def make_kernel(cfg):
    sizes, L = cfg["sizes"], cfg["L"]
    n_oh, n_cat, n_cont = cfg["n_oh"], cfg["n_cat"], cfg["n_cont"]
    oh_offsets, cont_row_off = cfg["oh_offsets"], cfg["cont_row_off"]
    w_offs, w_rows, w_cols = cfg["w_offs"], cfg["w_rows"], cfg["w_cols"]
    lane_dense_out = cfg["lane_dense_out"]

    def kernel(cat_ref, cont_ref, proj_ref, vec_ref, w_ref, out_ref):
        B = cat_ref.shape[0]

        # ---- fused embedding lookup + concat ----
        # one-hot(xb_cat) @ proj places every table row in its concat slot;
        # xb_cont @ identity-block places the continuous features. Exact math.
        lane = jax.lax.broadcasted_iota(jnp.int32, (B, n_oh), 1)
        oh = jnp.zeros((B, n_oh), jnp.float32)
        for i in range(n_cat):
            idx = cat_ref[:, i:i + 1] + oh_offsets[i]            # (B, 1)
            oh = oh + jnp.where(lane == idx, 1.0, 0.0).astype(jnp.float32)
        x = jnp.dot(oh, proj_ref[0:n_oh, :],
                    preferred_element_type=jnp.float32)
        x = x + jnp.dot(cont_ref[...],
                        proj_ref[cont_row_off:cont_row_off + n_cont, :],
                        preferred_element_type=jnp.float32)       # (B, hidden_1)

        # ---- [BN -> ReLU -> Linear] x L ----
        for l in range(L):
            f_in, f_out = sizes[l], sizes[l + 1]
            gamma = vec_ref[3 * l:3 * l + 1, 0:f_in]              # (1, f_in)
            beta = vec_ref[3 * l + 1:3 * l + 2, 0:f_in]
            bias = vec_ref[3 * l + 2:3 * l + 3, 0:f_out]          # (1, f_out)

            # BatchNorm1d, full-batch biased stats (training mode), single-pass
            # variance, gamma folded into the normalization scale.
            mean = jnp.mean(x, axis=0, keepdims=True)
            mean_sq = jnp.mean(x * x, axis=0, keepdims=True)
            var = jnp.maximum(mean_sq - mean * mean, 0.0)
            scale = gamma * jax.lax.rsqrt(var + BN_EPS)           # EUP rsqrt
            shift = beta - mean * scale
            h = jnp.maximum(x * scale + shift, 0.0)               # ReLU(BN(x))

            w = w_ref[w_offs[l]:w_offs[l] + w_rows[l], 0:w_cols[l]]
            if l == L - 1 and lane_dense_out:
                # Final fan_out == 1: contract feature axes of (1, K) and
                # (B, K) -> (1, B): batch lands on the lane axis, so the HBM
                # store is dense instead of a masked (B, 1) partial store.
                out_ref[...] = jax.lax.dot_general(
                    w, h, (((1,), (1,)), ((), ())),
                    preferred_element_type=jnp.float32) + bias    # (1, B)
            else:
                x = jnp.dot(h, w,
                            preferred_element_type=jnp.float32) + bias

        if not lane_dense_out:
            out_ref[...] = x

    return kernel


def build_forward(cfg):
    kernel = make_kernel(cfg)
    vmem = pl.BlockSpec(memory_space=pltpu.MemorySpace.VMEM)

    @jax.jit
    def forward(xb_cat, xb_cont, packed):
        B = xb_cat.shape[0]
        out_shape = (1, B) if cfg["lane_dense_out"] else (B, cfg["sizes"][-1])
        out = pl.pallas_call(
            kernel,
            out_shape=jax.ShapeDtypeStruct(out_shape, jnp.float32),
            in_specs=[vmem] * 5,
            out_specs=vmem,
        )(xb_cat.astype(jnp.int32), xb_cont.astype(jnp.float32),
          packed["proj"], packed["vecs"], packed["w"])
        return jnp.squeeze(out)   # x.squeeze() in the PyTorch forward

    return forward


def reference_forward(xb_cat, xb_cont, params):
    """Pure-JAX reference matching the PyTorch module (training-mode BN)."""
    x_embs = [tab[xb_cat[:, i]] for i, tab in enumerate(params["emb_tables"])]
    x = jnp.concatenate(x_embs + [xb_cont.astype(jnp.float32)], axis=1)
    for lp in params["layers"]:
        mean = jnp.mean(x, axis=0, keepdims=True)
        var = jnp.mean((x - mean) ** 2, axis=0, keepdims=True)
        xn = (x - mean) / jnp.sqrt(var + BN_EPS) * lp["gamma"] + lp["beta"]
        x = jnp.maximum(xn, 0.0) @ lp["w"].T + lp["bias"]
    return jnp.squeeze(x)


if __name__ == "__main__":
    key = jax.random.PRNGKey(0)

    cont_cols = ["c0", "c1", "c2", "c3"]          # 4 continuous features
    emb_sizes = [(10, 3), (7, 2)]                 # 2 categorical cols -> dims 3+2
    fc_sizes = [32, 16, 1]                        # hidden_1 = 9 -> 32 -> 16 -> 1
    batch = 8

    cfg = make_config(cont_cols, emb_sizes, fc_sizes)
    key, kparams, kcat0, kcat1, kcont = jax.random.split(key, 5)
    params = init_params(kparams, cfg)
    packed = pack_params(params, cfg)             # one-time packing (3 slabs)

    xb_cat = jnp.stack(
        [jax.random.randint(kcat0, (batch,), 0, emb_sizes[0][0]),
         jax.random.randint(kcat1, (batch,), 0, emb_sizes[1][0])],
        axis=1).astype(jnp.int32)                 # (8, 2)
    xb_cont = jax.random.normal(kcont, (batch, len(cont_cols)), jnp.float32)

    forward = build_forward(cfg)
    out = forward(xb_cat, xb_cont, packed)
    jax.block_until_ready(out)
    assert out.shape == (batch,), out.shape

    ref = reference_forward(xb_cat, xb_cont, params)
    assert jnp.allclose(out, ref, atol=5e-2, rtol=5e-2), (out, ref)

    print("KERNEL_OK")
</pallas_src>

<mosaic_0001>
module attributes {stable_mosaic.version = 11 : i64} {
  func.func @kernel(%arg0: memref<8x2xi32, #tpu.memory_space<vmem>>, %arg1: memref<8x4xf32, #tpu.memory_space<vmem>>, %arg2: memref<28x9xf32, #tpu.memory_space<vmem>>, %arg3: memref<9x32xf32, #tpu.memory_space<vmem>>, %arg4: memref<49x32xf32, #tpu.memory_space<vmem>>, %arg5: memref<1x8xf32, #tpu.memory_space<vmem>>) attributes {dimension_semantics = [], scalar_prefetch = 0 : i64, scratch_operands = 0 : i64, tpu.core_type = #tpu.core_type<tc>} {
    %0 = tpu.iota {dimensions = array<i32: 1>} : vector<8x17xi32>
    %cst = arith.constant 0.000000e+00 : f32
    %1 = vector.broadcast %cst : f32 to vector<8x17xf32>
    %c0 = arith.constant 0 : index
    %c0_0 = arith.constant 0 : index
    %2 = vector.load %arg0[%c0, %c0_0] : memref<8x2xi32, #tpu.memory_space<vmem>>, vector<8x1xi32>
    %c0_i32 = arith.constant 0 : i32
    %3 = vector.broadcast %c0_i32 : i32 to vector<8x1xi32>
    %4 = arith.addi %2, %3 : vector<8x1xi32>
    %5 = vector.broadcast %4 : vector<8x1xi32> to vector<8x17xi32>
    %6 = arith.cmpi eq, %0, %5 : vector<8x17xi32>
    %cst_1 = arith.constant 1.000000e+00 : f32
    %cst_2 = arith.constant 0.000000e+00 : f32
    %7 = vector.broadcast %cst_1 : f32 to vector<8x17xf32>
    %8 = vector.broadcast %cst_2 : f32 to vector<8x17xf32>
    %9 = arith.select %6, %7, %8 : vector<8x17xi1>, vector<8x17xf32>
    %10 = arith.addf %1, %9 : vector<8x17xf32>
    %c0_3 = arith.constant 0 : index
    %c1 = arith.constant 1 : index
    %11 = vector.load %arg0[%c0_3, %c1] : memref<8x2xi32, #tpu.memory_space<vmem>>, vector<8x1xi32>
    %c10_i32 = arith.constant 10 : i32
    %12 = vector.broadcast %c10_i32 : i32 to vector<8x1xi32>
    %13 = arith.addi %11, %12 : vector<8x1xi32>
    %14 = vector.broadcast %13 : vector<8x1xi32> to vector<8x17xi32>
    %15 = arith.cmpi eq, %0, %14 : vector<8x17xi32>
    %cst_4 = arith.constant 1.000000e+00 : f32
    %cst_5 = arith.constant 0.000000e+00 : f32
    %16 = vector.broadcast %cst_4 : f32 to vector<8x17xf32>
    %17 = vector.broadcast %cst_5 : f32 to vector<8x17xf32>
    %18 = arith.select %15, %16, %17 : vector<8x17xi1>, vector<8x17xf32>
    %19 = arith.addf %10, %18 : vector<8x17xf32>
    %c0_6 = arith.constant 0 : index
    %c0_7 = arith.constant 0 : index
    %20 = vector.load %arg2[%c0_6, %c0_7] : memref<28x9xf32, #tpu.memory_space<vmem>>, vector<17x9xf32>
    %cst_8 = arith.constant dense<0.000000e+00> : vector<8x9xf32>
    %21 = tpu.matmul %19, %20, %cst_8 {dimension_numbers = #tpu.dot_dimension_numbers<[1], [0], [0], [1], [0, 0, 1, 1], [], []>} : vector<8x17xf32>, vector<17x9xf32>, vector<8x9xf32> -> vector<8x9xf32>
    %c0_9 = arith.constant 0 : index
    %c0_10 = arith.constant 0 : index
    %22 = vector.load %arg1[%c0_9, %c0_10] : memref<8x4xf32, #tpu.memory_space<vmem>>, vector<8x4xf32>
    %c24 = arith.constant 24 : index
    %c0_11 = arith.constant 0 : index
    %23 = vector.load %arg2[%c24, %c0_11] : memref<28x9xf32, #tpu.memory_space<vmem>>, vector<4x9xf32>
    %cst_12 = arith.constant dense<0.000000e+00> : vector<8x9xf32>
    %24 = tpu.matmul %22, %23, %cst_12 {dimension_numbers = #tpu.dot_dimension_numbers<[1], [0], [0], [1], [0, 0, 1, 1], [], []>} : vector<8x4xf32>, vector<4x9xf32>, vector<8x9xf32> -> vector<8x9xf32>
    %25 = arith.addf %21, %24 : vector<8x9xf32>
    %c0_13 = arith.constant 0 : index
    %c0_14 = arith.constant 0 : index
    %26 = vector.load %arg3[%c0_13, %c0_14] : memref<9x32xf32, #tpu.memory_space<vmem>>, vector<1x9xf32>
    %c1_15 = arith.constant 1 : index
    %c0_16 = arith.constant 0 : index
    %27 = vector.load %arg3[%c1_15, %c0_16] : memref<9x32xf32, #tpu.memory_space<vmem>>, vector<1x9xf32>
    %c2 = arith.constant 2 : index
    %c0_17 = arith.constant 0 : index
    %28 = vector.load %arg3[%c2, %c0_17] : memref<9x32xf32, #tpu.memory_space<vmem>>, vector<1x32xf32>
    %cst_18 = arith.constant dense<0.000000e+00> : vector<9xf32>
    %29 = vector.multi_reduction <add>, %25, %cst_18 [0] : vector<8x9xf32> to vector<9xf32>
    %30 = vector.shape_cast %29 : vector<9xf32> to vector<1x9xf32>
    %cst_19 = arith.constant 8.000000e+00 : f32
    %31 = vector.broadcast %cst_19 : f32 to vector<1x9xf32>
    %32 = arith.divf %30, %31 : vector<1x9xf32>
    %33 = arith.mulf %25, %25 : vector<8x9xf32>
    %cst_20 = arith.constant dense<0.000000e+00> : vector<9xf32>
    %34 = vector.multi_reduction <add>, %33, %cst_20 [0] : vector<8x9xf32> to vector<9xf32>
    %35 = vector.shape_cast %34 : vector<9xf32> to vector<1x9xf32>
    %cst_21 = arith.constant 8.000000e+00 : f32
    %36 = vector.broadcast %cst_21 : f32 to vector<1x9xf32>
    %37 = arith.divf %35, %36 : vector<1x9xf32>
    %38 = arith.mulf %32, %32 : vector<1x9xf32>
    %39 = arith.subf %37, %38 : vector<1x9xf32>
    %cst_22 = arith.constant 0.000000e+00 : f32
    %40 = vector.broadcast %cst_22 : f32 to vector<1x9xf32>
    %41 = arith.maximumf %39, %40 : vector<1x9xf32>
    %cst_23 = arith.constant 9.99999974E-6 : f32
    %42 = vector.broadcast %cst_23 : f32 to vector<1x9xf32>
    %43 = arith.addf %41, %42 : vector<1x9xf32>
    %44 = math.rsqrt %43 : vector<1x9xf32>
    %45 = arith.mulf %26, %44 : vector<1x9xf32>
    %46 = arith.mulf %32, %45 : vector<1x9xf32>
    %47 = arith.subf %27, %46 : vector<1x9xf32>
    %48 = vector.broadcast %45 : vector<1x9xf32> to vector<8x9xf32>
    %49 = arith.mulf %25, %48 : vector<8x9xf32>
    %50 = vector.broadcast %47 : vector<1x9xf32> to vector<8x9xf32>
    %51 = arith.addf %49, %50 : vector<8x9xf32>
    %cst_24 = arith.constant 0.000000e+00 : f32
    %52 = vector.broadcast %cst_24 : f32 to vector<8x9xf32>
    %53 = arith.maximumf %51, %52 : vector<8x9xf32>
    %c0_25 = arith.constant 0 : index
    %c0_26 = arith.constant 0 : index
    %54 = vector.load %arg4[%c0_25, %c0_26] : memref<49x32xf32, #tpu.memory_space<vmem>>, vector<9x32xf32>
    %cst_27 = arith.constant dense<0.000000e+00> : vector<8x32xf32>
    %55 = tpu.matmul %53, %54, %cst_27 {dimension_numbers = #tpu.dot_dimension_numbers<[1], [0], [0], [1], [0, 0, 1, 1], [], []>} : vector<8x9xf32>, vector<9x32xf32>, vector<8x32xf32> -> vector<8x32xf32>
    %56 = vector.broadcast %28 : vector<1x32xf32> to vector<8x32xf32>
    %57 = arith.addf %55, %56 : vector<8x32xf32>
    %c3 = arith.constant 3 : index
    %c0_28 = arith.constant 0 : index
    %58 = vector.load %arg3[%c3, %c0_28] : memref<9x32xf32, #tpu.memory_space<vmem>>, vector<1x32xf32>
    %c4 = arith.constant 4 : index
    %c0_29 = arith.constant 0 : index
    %59 = vector.load %arg3[%c4, %c0_29] : memref<9x32xf32, #tpu.memory_space<vmem>>, vector<1x32xf32>
    %c5 = arith.constant 5 : index
    %c0_30 = arith.constant 0 : index
    %60 = vector.load %arg3[%c5, %c0_30] : memref<9x32xf32, #tpu.memory_space<vmem>>, vector<1x16xf32>
    %cst_31 = arith.constant dense<0.000000e+00> : vector<32xf32>
    %61 = vector.multi_reduction <add>, %57, %cst_31 [0] : vector<8x32xf32> to vector<32xf32>
    %62 = vector.shape_cast %61 : vector<32xf32> to vector<1x32xf32>
    %cst_32 = arith.constant 8.000000e+00 : f32
    %63 = vector.broadcast %cst_32 : f32 to vector<1x32xf32>
    %64 = arith.divf %62, %63 : vector<1x32xf32>
    %65 = arith.mulf %57, %57 : vector<8x32xf32>
    %cst_33 = arith.constant dense<0.000000e+00> : vector<32xf32>
    %66 = vector.multi_reduction <add>, %65, %cst_33 [0] : vector<8x32xf32> to vector<32xf32>
    %67 = vector.shape_cast %66 : vector<32xf32> to vector<1x32xf32>
    %cst_34 = arith.constant 8.000000e+00 : f32
    %68 = vector.broadcast %cst_34 : f32 to vector<1x32xf32>
    %69 = arith.divf %67, %68 : vector<1x32xf32>
    %70 = arith.mulf %64, %64 : vector<1x32xf32>
    %71 = arith.subf %69, %70 : vector<1x32xf32>
    %cst_35 = arith.constant 0.000000e+00 : f32
    %72 = vector.broadcast %cst_35 : f32 to vector<1x32xf32>
    %73 = arith.maximumf %71, %72 : vector<1x32xf32>
    %cst_36 = arith.constant 9.99999974E-6 : f32
    %74 = vector.broadcast %cst_36 : f32 to vector<1x32xf32>
    %75 = arith.addf %73, %74 : vector<1x32xf32>
    %76 = math.rsqrt %75 : vector<1x32xf32>
    %77 = arith.mulf %58, %76 : vector<1x32xf32>
    %78 = arith.mulf %64, %77 : vector<1x32xf32>
    %79 = arith.subf %59, %78 : vector<1x32xf32>
    %80 = vector.broadcast %77 : vector<1x32xf32> to vector<8x32xf32>
    %81 = arith.mulf %57, %80 : vector<8x32xf32>
    %82 = vector.broadcast %79 : vector<1x32xf32> to vector<8x32xf32>
    %83 = arith.addf %81, %82 : vector<8x32xf32>
    %cst_37 = arith.constant 0.000000e+00 : f32
    %84 = vector.broadcast %cst_37 : f32 to vector<8x32xf32>
    %85 = arith.maximumf %83, %84 : vector<8x32xf32>
    %c16 = arith.constant 16 : index
    %c0_38 = arith.constant 0 : index
    %86 = vector.load %arg4[%c16, %c0_38] : memref<49x32xf32, #tpu.memory_space<vmem>>, vector<32x16xf32>
    %cst_39 = arith.constant dense<0.000000e+00> : vector<8x16xf32>
    %87 = tpu.matmul %85, %86, %cst_39 {dimension_numbers = #tpu.dot_dimension_numbers<[1], [0], [0], [1], [0, 0, 1, 1], [], []>} : vector<8x32xf32>, vector<32x16xf32>, vector<8x16xf32> -> vector<8x16xf32>
    %88 = vector.broadcast %60 : vector<1x16xf32> to vector<8x16xf32>
    %89 = arith.addf %87, %88 : vector<8x16xf32>
    %c6 = arith.constant 6 : index
    %c0_40 = arith.constant 0 : index
    %90 = vector.load %arg3[%c6, %c0_40] : memref<9x32xf32, #tpu.memory_space<vmem>>, vector<1x16xf32>
    %c7 = arith.constant 7 : index
    %c0_41 = arith.constant 0 : index
    %91 = vector.load %arg3[%c7, %c0_41] : memref<9x32xf32, #tpu.memory_space<vmem>>, vector<1x16xf32>
    %c8 = arith.constant 8 : index
    %c0_42 = arith.constant 0 : index
    %92 = vector.load %arg3[%c8, %c0_42] : memref<9x32xf32, #tpu.memory_space<vmem>>, vector<1x1xf32>
    %cst_43 = arith.constant dense<0.000000e+00> : vector<16xf32>
    %93 = vector.multi_reduction <add>, %89, %cst_43 [0] : vector<8x16xf32> to vector<16xf32>
    %94 = vector.shape_cast %93 : vector<16xf32> to vector<1x16xf32>
    %cst_44 = arith.constant 8.000000e+00 : f32
    %95 = vector.broadcast %cst_44 : f32 to vector<1x16xf32>
    %96 = arith.divf %94, %95 : vector<1x16xf32>
    %97 = arith.mulf %89, %89 : vector<8x16xf32>
    %cst_45 = arith.constant dense<0.000000e+00> : vector<16xf32>
    %98 = vector.multi_reduction <add>, %97, %cst_45 [0] : vector<8x16xf32> to vector<16xf32>
    %99 = vector.shape_cast %98 : vector<16xf32> to vector<1x16xf32>
    %cst_46 = arith.constant 8.000000e+00 : f32
    %100 = vector.broadcast %cst_46 : f32 to vector<1x16xf32>
    %101 = arith.divf %99, %100 : vector<1x16xf32>
    %102 = arith.mulf %96, %96 : vector<1x16xf32>
    %103 = arith.subf %101, %102 : vector<1x16xf32>
    %cst_47 = arith.constant 0.000000e+00 : f32
    %104 = vector.broadcast %cst_47 : f32 to vector<1x16xf32>
    %105 = arith.maximumf %103, %104 : vector<1x16xf32>
    %cst_48 = arith.constant 9.99999974E-6 : f32
    %106 = vector.broadcast %cst_48 : f32 to vector<1x16xf32>
    %107 = arith.addf %105, %106 : vector<1x16xf32>
    %108 = math.rsqrt %107 : vector<1x16xf32>
    %109 = arith.mulf %90, %108 : vector<1x16xf32>
    %110 = arith.mulf %96, %109 : vector<1x16xf32>
    %111 = arith.subf %91, %110 : vector<1x16xf32>
    %112 = vector.broadcast %109 : vector<1x16xf32> to vector<8x16xf32>
    %113 = arith.mulf %89, %112 : vector<8x16xf32>
    %114 = vector.broadcast %111 : vector<1x16xf32> to vector<8x16xf32>
    %115 = arith.addf %113, %114 : vector<8x16xf32>
    %cst_49 = arith.constant 0.000000e+00 : f32
    %116 = vector.broadcast %cst_49 : f32 to vector<8x16xf32>
    %117 = arith.maximumf %115, %116 : vector<8x16xf32>
    %c48 = arith.constant 48 : index
    %c0_50 = arith.constant 0 : index
    %118 = vector.load %arg4[%c48, %c0_50] : memref<49x32xf32, #tpu.memory_space<vmem>>, vector<1x16xf32>
    %cst_51 = arith.constant dense<0.000000e+00> : vector<1x8xf32>
    %119 = tpu.matmul %118, %117, %cst_51 {dimension_numbers = #tpu.dot_dimension_numbers<[1], [1], [0], [0], [0, 0, 1, 0], [], []>} : vector<1x16xf32>, vector<8x16xf32>, vector<1x8xf32> -> vector<1x8xf32>
    %120 = vector.broadcast %92 : vector<1x1xf32> to vector<1x8xf32>
    %121 = arith.addf %119, %120 : vector<1x8xf32>
    %c0_52 = arith.constant 0 : index
    %c0_53 = arith.constant 0 : index
    %122 = vector.load %arg5[%c0_52, %c0_53] : memref<1x8xf32, #tpu.memory_space<vmem>>, vector<1x8xf32>
    tpu.vector_store %arg5[%c0_52, %c0_53], %121 {strides = array<i32>} : memref<1x8xf32, #tpu.memory_space<vmem>>, vector<1x8xf32>,
    return
  }
}

</mosaic_0001>

<llo_original>
// kernel: forward.1
$region0: #{forward.1}
  #allocation0 [shape = 'u32[]', space=smem, size = 0x4, offset = 0x4, fixed_abs, tag = 'smem constant byte address 0x4 - core index']
  #allocation1 [shape = 'u32[144,128]{1,0:T(1,128)}', space=vmem, size = 0x12000, scoped, tag = 'internal scratch']
  %s0 = inlined_call_operand.vmem [shape: s32[8,2], index: 0, kind: input, shape index: {}]
  %s1 = inlined_call_operand.vmem [shape: f32[8,4], index: 1, kind: input, shape index: {}]
  %s2 = inlined_call_operand.vmem [shape: f32[28,9], index: 2, kind: input, shape index: {}]
  %s3 = inlined_call_operand.vmem [shape: f32[9,32], index: 3, kind: input, shape index: {}]
  %s4 = inlined_call_operand.vmem [shape: f32[49,32], index: 4, kind: input, shape index: {}]
  %s5 = inlined_call_operand.hbm [shape: f32[1,8], index: 5, kind: output, shape index: {}]
  %s6 = sld [smem:[#allocation0]]
  $region30: #{forward.1} parent=0
    _
  %s8 = ssub.s32 1, %s6
  %s9 = scalar_select 0, %s8, %s6
  $region1: #{forward.1} parent=0
    #allocation2 [shape = 'u8[512]{0}', space=vmem, size = 0x400, scoped, tag = 'output window, operand 0, single buffered']
    #allocation3 [shape = 's32[1]{0}', space=sflag, size = 0x4, scoped, tag = 'scoped memory for forward.1']
    %10 = vsyncpa [#allocation3], 0
    // Predicated region
    $region2: #{forward.1} parent=1 // pred_check
      _
    $region3: #{forward.1} parent=1 // pred_check_branch
      %12 = sbr.rel (0) target = $region5
    $region4: #{forward.1} parent=1 // pred_region
      _
    $region5: #{forward.1} parent=1 // pred_fallthru
      _
    // Predicated region
    $region6: #{forward.1} parent=1 // pred_check
      _
    $region7: #{forward.1} parent=1 // pred_check_branch
      %14 = sbr.rel (0) target = $region9
    $region8: #{forward.1} parent=1 // pred_region
      _
    $region9: #{forward.1} parent=1 // pred_fallthru
      _
    // Predicated region
    $region10: #{forward.1} parent=1 // pred_check
      _
    $region11: #{forward.1} parent=1 // pred_check_branch
      %16 = sbr.rel (0) target = $region13
    $region12: #{forward.1} parent=1 // pred_region
      _
    $region13: #{forward.1} parent=1 // pred_fallthru
      _
    // Predicated region
    $region14: #{forward.1} parent=1 // pred_check
      _
    $region15: #{forward.1} parent=1 // pred_check_branch
      %18 = sbr.rel (0) target = $region17
    $region16: #{forward.1} parent=1 // pred_region
      _
    $region17: #{forward.1} parent=1 // pred_fallthru
      _
    // Predicated region
    $region18: #{forward.1} parent=1 // pred_check
      _
    $region19: #{forward.1} parent=1 // pred_check_branch
      %20 = sbr.rel (0) target = $region21
    $region20: #{forward.1} parent=1 // pred_region
      _
    $region21: #{forward.1} parent=1 // pred_fallthru
      _
    %v21 = vlaneseq
    %v22 = vand.u32 %v21, 127
    %v23 = vld [vmem:[%s0] sm:$0xff]
    %24 = vset.pattern.permute.xlu0 0
    %25 = vperm.xlu0 %24, %v23
    %v26 = vpop.permute.xlu0 %25
    %vm27 = vcmp.eq.s32.totalorder %v22, %v26
    %v28 = vsel %vm27, 1.0, 0.0
    %v29 = vadd.f32 %v28, 0.0
    %v30 = vadd.s32 %v23, 10
    %31 = vset.pattern.permute.xlu0 1
    %32 = vperm.xlu0 %31, %v30
    %v33 = vpop.permute.xlu0 %32
    %vm34 = vcmp.eq.s32.totalorder %v22, %v33
    %v35 = vsel %vm34, 1.0, 0.0
    %v36 = vadd.f32 %v29, %v35
    %v37 = vld [vmem:[%s2] sm:$0xff]
    %v38 = vld [vmem:[%s2 + $0x8] sm:$0xff]
    %v39 = vld [vmem:[%s2 + $0x10] sm:$0x1]
    %v40 = vld [vmem:[%s1] sm:$0xff]
    %v41 = vld [vmem:[%s2 + $0x18] sm:$0xf]
    %vm42 = vcmask 31744
    %v44 = vsel %vm42, %v40, 0
    %vm46 = vcmask 1043456
    %v48 = vsel %vm46, %v41, 0
    %50 = vmatprep.subr.mxu0 0.0
    %51 = vmatpush1.msra.mxu0 %v48
    %52 = vmatprep.subr.mxu0 0.0
    %53 = vmatpush1.msra.mxu0 0.0
    %54 = vmatprep.subr.mxu0 0.0
    %55 = vmatpush1.msra.mxu0 0.0
    %56 = vmatprep.subr.mxu0 0.0
    %57 = vmatpush1.msra.mxu0 0.0
    %58 = vmatprep.subr.mxu0 0.0
    %59 = vmatpush1.msra.mxu0 0.0
    %60 = vmatprep.subr.mxu0 0.0
    %61 = vmatpush1.msra.mxu0 0.0
    %62 = vmatprep.subr.mxu0 0.0
    %63 = vmatpush1.msra.mxu0 0.0
    %64 = vmatprep.subr.mxu0 0.0
    %65 = vmatpush1.msra.mxu0 0.0
    %66 = vmatprep.subr.mxu0 0.0
    %67 = vmatpush1.msra.mxu0 0.0
    %68 = vmatprep.subr.mxu0 0.0
    %69 = vmatpush1.msra.mxu0 0.0
    %70 = vmatprep.subr.mxu0 0.0
    %71 = vmatpush1.msra.mxu0 0.0
    %72 = vmatprep.subr.mxu0 0.0
    %73 = vmatpush1.msra.mxu0 0.0
    %74 = vmatprep.subr.mxu0 0.0
    %75 = vmatpush1.msra.mxu0 0.0
    %76 = vmatprep.subr.mxu0 0.0
    %77 = vmatpush1.msra.mxu0 0.0
    %78 = vmatprep.subr.mxu0 0.0
    %79 = vmatpush1.msra.mxu0 0.0
    %80 = vmatprep.subr.mxu0 0.0
    %81 = vmatpush1.msra.mxu0 0.0
    %82 = vmatprep.subr.mxu0 0.0
    %83 = vmatpush1.msra.mxu0 0.0
    %84 = vmatprep.subr.mxu0 0.0
    %85 = vmatpush1.msra.mxu0 0.0
    %86 = vmatprep.subr.mxu0 0.0
    %87 = vmatpush1.msra.mxu0 0.0
    %88 = vmatprep.subr.mxu0 0.0
    %89 = vmatpush1.msra.mxu0 0.0
    %90 = vmatprep.subr.mxu0 0.0
    %91 = vmatpush1.msra.mxu0 0.0
    %92 = vmatprep.subr.mxu0 0.0
    %93 = vmatpush1.msra.mxu0 0.0
    %94 = vmatprep.subr.mxu0 0.0
    %95 = vmatpush1.msra.mxu0 0.0
    %96 = vmatprep.subr.mxu0 0.0
    %97 = vmatpush1.msra.mxu0 0.0
    %98 = vmatprep.subr.mxu0 0.0
    %99 = vmatpush1.msra.mxu0 0.0
    %100 = vmatprep.subr.mxu0 0.0
    %101 = vmatpush1.msra.mxu0 0.0
    %102 = vmatprep.subr.mxu0 0.0
    %103 = vmatpush1.msra.mxu0 0.0
    %104 = vmatprep.subr.mxu0 0.0
    %105 = vmatpush1.msra.mxu0 0.0
    %106 = vmatprep.subr.mxu0 0.0
    %107 = vmatpush1.msra.mxu0 0.0
    %108 = vmatprep.subr.mxu0 0.0
    %109 = vmatpush1.msra.mxu0 0.0
    %110 = vmatprep.subr.mxu0 0.0
    %111 = vmatpush1.msra.mxu0 0.0
    %112 = vmatprep.subr.mxu0 0.0
    %113 = vmatpush1.msra.mxu0 0.0
    %114 = vmatprep.mubr.f32.mxu0 0.0
    %115 = vmatmul.mubr.f32.gmra.mrb[0].mxu0 %v44
    %v116 = vpop.f32.mrb[0].mxu0
    %v117 = vadd.f32 0.0, %v116
    %v118 = vpop.f32.mrb[0].mxu0
    %119 = vdwg.mxu0
    %vm120 = vcmask 138240
    %v122 = vsel %vm120, %v36, 0
    %vm124 = vcmask 1040384
    %v126 = vsel %vm124, %v39, 0
    %128 = vmatprep.subr.mxu0 0.0
    %129 = vmatpush1.msra.mxu0 %v37
    %130 = vmatprep.subr.mxu0 0.0
    %131 = vmatpush1.msra.mxu0 %v38
    %132 = vmatprep.subr.mxu0 0.0
    %133 = vmatpush1.msra.mxu0 %v126
    %134 = vmatprep.subr.mxu0 0.0
    %135 = vmatpush1.msra.mxu0 0.0
    %136 = vmatprep.subr.mxu0 0.0
    %137 = vmatpush1.msra.mxu0 0.0
    %138 = vmatprep.subr.mxu0 0.0
    %139 = vmatpush1.msra.mxu0 0.0
    %140 = vmatprep.subr.mxu0 0.0
    %141 = vmatpush1.msra.mxu0 0.0
    %142 = vmatprep.subr.mxu0 0.0
    %143 = vmatpush1.msra.mxu0 0.0
    %144 = vmatprep.subr.mxu0 0.0
    %145 = vmatpush1.msra.mxu0 0.0
    %146 = vmatprep.subr.mxu0 0.0
    %147 = vmatpush1.msra.mxu0 0.0
    %148 = vmatprep.subr.mxu0 0.0
    %149 = vmatpush1.msra.mxu0 0.0
    %150 = vmatprep.subr.mxu0 0.0
    %151 = vmatpush1.msra.mxu0 0.0
    %152 = vmatprep.subr.mxu0 0.0
    %153 = vmatpush1.msra.mxu0 0.0
    %154 = vmatprep.subr.mxu0 0.0
    %155 = vmatpush1.msra.mxu0 0.0
    %156 = vmatprep.subr.mxu0 0.0
    %157 = vmatpush1.msra.mxu0 0.0
    %158 = vmatprep.subr.mxu0 0.0
    %159 = vmatpush1.msra.mxu0 0.0
    %160 = vmatprep.subr.mxu0 0.0
    %161 = vmatpush1.msra.mxu0 0.0
    %162 = vmatprep.subr.mxu0 0.0
    %163 = vmatpush1.msra.mxu0 0.0
    %164 = vmatprep.subr.mxu0 0.0
    %165 = vmatpush1.msra.mxu0 0.0
    %166 = vmatprep.subr.mxu0 0.0
    %167 = vmatpush1.msra.mxu0 0.0
    %168 = vmatprep.subr.mxu0 0.0
    %169 = vmatpush1.msra.mxu0 0.0
    %170 = vmatprep.subr.mxu0 0.0
    %171 = vmatpush1.msra.mxu0 0.0
    %172 = vmatprep.subr.mxu0 0.0
    %173 = vmatpush1.msra.mxu0 0.0
    %174 = vmatprep.subr.mxu0 0.0
    %175 = vmatpush1.msra.mxu0 0.0
    %176 = vmatprep.subr.mxu0 0.0
    %177 = vmatpush1.msra.mxu0 0.0
    %178 = vmatprep.subr.mxu0 0.0
    %179 = vmatpush1.msra.mxu0 0.0
    %180 = vmatprep.subr.mxu0 0.0
    %181 = vmatpush1.msra.mxu0 0.0
    %182 = vmatprep.subr.mxu0 0.0
    %183 = vmatpush1.msra.mxu0 0.0
    %184 = vmatprep.subr.mxu0 0.0
    %185 = vmatpush1.msra.mxu0 0.0
    %186 = vmatprep.subr.mxu0 0.0
    %187 = vmatpush1.msra.mxu0 0.0
    %188 = vmatprep.subr.mxu0 0.0
    %189 = vmatpush1.msra.mxu0 0.0
    %190 = vmatprep.subr.mxu0 0.0
    %191 = vmatpush1.msra.mxu0 0.0
    %192 = vmatprep.mubr.f32.mxu0 0.0
    %193 = vmatmul.mubr.f32.gmra.mrb[0].mxu0 %v122
    %v194 = vpop.f32.mrb[0].mxu0
    %v195 = vadd.f32 %v117, %v194
    %v196 = vpop.f32.mrb[0].mxu0
    %197 = vdwg.mxu0
    %v198 = vld [vmem:[%s3] sm:$0x1]
    %v199 = vld [vmem:[%s3 + $0x1] sm:$0x1]
    %v200 = vld [vmem:[%s3 + $0x2] sm:$0x1]
    %vm201 = vcmask 72704
    %v202 = vsel %vm201, %v195, 0.0
    %v203 = vrot.slane %v202, 4
    %v204 = vadd.f32 %v202, %v203
    %v205 = vrot.slane %v204, 2
    %v206 = vadd.f32 %v204, %v205
    %v207 = vrot.slane %v206, 1
    %v208 = vadd.f32 %v206, %v207
    %v209 = vrcp.pop 8.0
    %v210 = vmul.f32 %v208, %v209
    %v211 = vmul.f32 %v195, %v195
    %v212 = vsel %vm201, %v211, 0.0
    %v213 = vrot.slane %v212, 4
    %v214 = vadd.f32 %v212, %v213
    %v215 = vrot.slane %v214, 2
    %v216 = vadd.f32 %v214, %v215
    %v217 = vrot.slane %v216, 1
    %v218 = vadd.f32 %v216, %v217
    %v219 = vmul.f32 %v218, %v209
    %v220 = vmul.f32 %v210, %v210
    %v221 = vsub.f32 %v219, %v220
    %v222 = vmax.f32 %v221, 0.0
    %v223 = vadd.f32 %v222, 1e-05
    %v224 = vrsqrt.pop %v223
    %v225 = vmul.f32 %v198, %v224
    %v226 = vmul.f32 %v210, %v225
    %v227 = vsub.f32 %v199, %v226
    %v228 = vlaneseq
    %v229 = vshrl.u32 %v228, 7
    %v230 = vsub.s32 0, %v229
    %v231 = vrot.slane %v225, %v230
    %v232 = vmul.f32 %v195, %v231
    %v233 = vlaneseq
    %v234 = vshrl.u32 %v233, 7
    %v235 = vsub.s32 0, %v234
    %v236 = vrot.slane %v227, %v235
    %v237 = vadd.f32 %v232, %v236
    %v238 = vmax.f32 %v237, 0.0
    %v239 = vld [vmem:[%s4] sm:$0xff]
    %v240 = vld [vmem:[%s4 + $0x8] sm:$0x1]
    %v241 = vlaneseq
    %v242 = vshrl.u32 %v241, 7
    %v243 = vsub.s32 0, %v242
    %v244 = vrot.slane %v200, %v243
    %v246 = vsel %vm201, %v238, 0
    %v249 = vsel %vm124, %v240, 0
    %251 = vmatprep.subr.mxu0 0.0
    %252 = vmatpush1.msra.mxu0 %v239
    %253 = vmatprep.subr.mxu0 0.0
    %254 = vmatpush1.msra.mxu0 %v249
    %255 = vmatprep.subr.mxu0 0.0
    %256 = vmatpush1.msra.mxu0 0.0
    %257 = vmatprep.subr.mxu0 0.0
    %258 = vmatpush1.msra.mxu0 0.0
    %259 = vmatprep.subr.mxu0 0.0
    %260 = vmatpush1.msra.mxu0 0.0
    %261 = vmatprep.subr.mxu0 0.0
    %262 = vmatpush1.msra.mxu0 0.0
    %263 = vmatprep.subr.mxu0 0.0
    %264 = vmatpush1.msra.mxu0 0.0
    %265 = vmatprep.subr.mxu0 0.0
    %266 = vmatpush1.msra.mxu0 0.0
    %267 = vmatprep.subr.mxu0 0.0
    %268 = vmatpush1.msra.mxu0 0.0
    %269 = vmatprep.subr.mxu0 0.0
    %270 = vmatpush1.msra.mxu0 0.0
    %271 = vmatprep.subr.mxu0 0.0
    %272 = vmatpush1.msra.mxu0 0.0
    %273 = vmatprep.subr.mxu0 0.0
    %274 = vmatpush1.msra.mxu0 0.0
    %275 = vmatprep.subr.mxu0 0.0
    %276 = vmatpush1.msra.mxu0 0.0
    %277 = vmatprep.subr.mxu0 0.0
    %278 = vmatpush1.msra.mxu0 0.0
    %279 = vmatprep.subr.mxu0 0.0
    %280 = vmatpush1.msra.mxu0 0.0
    %281 = vmatprep.subr.mxu0 0.0
    %282 = vmatpush1.msra.mxu0 0.0
    %283 = vmatprep.subr.mxu0 0.0
    %284 = vmatpush1.msra.mxu0 0.0
    %285 = vmatprep.subr.mxu0 0.0
    %286 = vmatpush1.msra.mxu0 0.0
    %287 = vmatprep.subr.mxu0 0.0
    %288 = vmatpush1.msra.mxu0 0.0
    %289 = vmatprep.subr.mxu0 0.0
    %290 = vmatpush1.msra.mxu0 0.0
    %291 = vmatprep.subr.mxu0 0.0
    %292 = vmatpush1.msra.mxu0 0.0
    %293 = vmatprep.subr.mxu0 0.0
    %294 = vmatpush1.msra.mxu0 0.0
    %295 = vmatprep.subr.mxu0 0.0
    %296 = vmatpush1.msra.mxu0 0.0
    %297 = vmatprep.subr.mxu0 0.0
    %298 = vmatpush1.msra.mxu0 0.0
    %299 = vmatprep.subr.mxu0 0.0
    %300 = vmatpush1.msra.mxu0 0.0
    %301 = vmatprep.subr.mxu0 0.0
    %302 = vmatpush1.msra.mxu0 0.0
    %303 = vmatprep.subr.mxu0 0.0
    %304 = vmatpush1.msra.mxu0 0.0
    %305 = vmatprep.subr.mxu0 0.0
    %306 = vmatpush1.msra.mxu0 0.0
    %307 = vmatprep.subr.mxu0 0.0
    %308 = vmatpush1.msra.mxu0 0.0
    %309 = vmatprep.subr.mxu0 0.0
    %310 = vmatpush1.msra.mxu0 0.0
    %311 = vmatprep.subr.mxu0 0.0
    %312 = vmatpush1.msra.mxu0 0.0
    %313 = vmatprep.subr.mxu0 0.0
    %314 = vmatpush1.msra.mxu0 0.0
    %315 = vmatprep.mubr.f32.mxu0 0.0
    %316 = vmatmul.mubr.f32.gmra.mrb[0].mxu0 %v246
    %v317 = vpop.f32.mrb[0].mxu0
    %v318 = vadd.f32 %v244, %v317
    %v319 = vpop.f32.mrb[0].mxu0
    %320 = vdwg.mxu0
    %v321 = vld [vmem:[%s3 + $0x3] sm:$0x1]
    %v322 = vld [vmem:[%s3 + $0x4] sm:$0x1]
    %v323 = vld [vmem:[%s3 + $0x5] sm:$0x1]
    %vm324 = vcmask 261120
    %v325 = vsel %vm324, %v318, 0.0
    %v326 = vrot.slane %v325, 4
    %v327 = vadd.f32 %v325, %v326
    %v328 = vrot.slane %v327, 2
    %v329 = vadd.f32 %v327, %v328
    %v330 = vrot.slane %v329, 1
    %v331 = vadd.f32 %v329, %v330
    %v332 = vmul.f32 %v331, %v209
    %v333 = vmul.f32 %v318, %v318
    %v334 = vsel %vm324, %v333, 0.0
    %v335 = vrot.slane %v334, 4
    %v336 = vadd.f32 %v334, %v335
    %v337 = vrot.slane %v336, 2
    %v338 = vadd.f32 %v336, %v337
    %v339 = vrot.slane %v338, 1
    %v340 = vadd.f32 %v338, %v339
    %v341 = vmul.f32 %v340, %v209
    %v342 = vmul.f32 %v332, %v332
    %v343 = vsub.f32 %v341, %v342
    %v344 = vmax.f32 %v343, 0.0
    %v345 = vadd.f32 %v344, 1e-05
    %v346 = vrsqrt.pop %v345
    %v347 = vmul.f32 %v321, %v346
    %v348 = vmul.f32 %v332, %v347
    %v349 = vsub.f32 %v322, %v348
    %v350 = vlaneseq
    %v351 = vshrl.u32 %v350, 7
    %v352 = vsub.s32 0, %v351
    %v353 = vrot.slane %v347, %v352
    %v354 = vmul.f32 %v318, %v353
    %v355 = vlaneseq
    %v356 = vshrl.u32 %v355, 7
    %v357 = vsub.s32 0, %v356
    %v358 = vrot.slane %v349, %v357
    %v359 = vadd.f32 %v354, %v358
    %v360 = vmax.f32 %v359, 0.0
    %v361 = vld [vmem:[%s4 + $0x10] sm:$0xff]
    %v362 = vld [vmem:[%s4 + $0x18] sm:$0xff]
    %v363 = vld [vmem:[%s4 + $0x20] sm:$0xff]
    %v364 = vld [vmem:[%s4 + $0x28] sm:$0xff]
    %v365 = vlaneseq
    %v366 = vshrl.u32 %v365, 7
    %v367 = vsub.s32 0, %v366
    %v368 = vrot.slane %v323, %v367
    %v370 = vsel %vm324, %v360, 0
    %372 = vmatprep.subr.mxu0 0.0
    %373 = vmatpush1.msra.mxu0 %v361
    %374 = vmatprep.subr.mxu0 0.0
    %375 = vmatpush1.msra.mxu0 %v362
    %376 = vmatprep.subr.mxu0 0.0
    %377 = vmatpush1.msra.mxu0 %v363
    %378 = vmatprep.subr.mxu0 0.0
    %379 = vmatpush1.msra.mxu0 %v364
    %380 = vmatprep.subr.mxu0 0.0
    %381 = vmatpush1.msra.mxu0 0.0
    %382 = vmatprep.subr.mxu0 0.0
    %383 = vmatpush1.msra.mxu0 0.0
    %384 = vmatprep.subr.mxu0 0.0
    %385 = vmatpush1.msra.mxu0 0.0
    %386 = vmatprep.subr.mxu0 0.0
    %387 = vmatpush1.msra.mxu0 0.0
    %388 = vmatprep.subr.mxu0 0.0
    %389 = vmatpush1.msra.mxu0 0.0
    %390 = vmatprep.subr.mxu0 0.0
    %391 = vmatpush1.msra.mxu0 0.0
    %392 = vmatprep.subr.mxu0 0.0
    %393 = vmatpush1.msra.mxu0 0.0
    %394 = vmatprep.subr.mxu0 0.0
    %395 = vmatpush1.msra.mxu0 0.0
    %396 = vmatprep.subr.mxu0 0.0
    %397 = vmatpush1.msra.mxu0 0.0
    %398 = vmatprep.subr.mxu0 0.0
    %399 = vmatpush1.msra.mxu0 0.0
    %400 = vmatprep.subr.mxu0 0.0
    %401 = vmatpush1.msra.mxu0 0.0
    %402 = vmatprep.subr.mxu0 0.0
    %403 = vmatpush1.msra.mxu0 0.0
    %404 = vmatprep.subr.mxu0 0.0
    %405 = vmatpush1.msra.mxu0 0.0
    %406 = vmatprep.subr.mxu0 0.0
    %407 = vmatpush1.msra.mxu0 0.0
    %408 = vmatprep.subr.mxu0 0.0
    %409 = vmatpush1.msra.mxu0 0.0
    %410 = vmatprep.subr.mxu0 0.0
    %411 = vmatpush1.msra.mxu0 0.0
    %412 = vmatprep.subr.mxu0 0.0
    %413 = vmatpush1.msra.mxu0 0.0
    %414 = vmatprep.subr.mxu0 0.0
    %415 = vmatpush1.msra.mxu0 0.0
    %416 = vmatprep.subr.mxu0 0.0
    %417 = vmatpush1.msra.mxu0 0.0
    %418 = vmatprep.subr.mxu0 0.0
    %419 = vmatpush1.msra.mxu0 0.0
    %420 = vmatprep.subr.mxu0 0.0
    %421 = vmatpush1.msra.mxu0 0.0
    %422 = vmatprep.subr.mxu0 0.0
    %423 = vmatpush1.msra.mxu0 0.0
    %424 = vmatprep.subr.mxu0 0.0
    %425 = vmatpush1.msra.mxu0 0.0
    %426 = vmatprep.subr.mxu0 0.0
    %427 = vmatpush1.msra.mxu0 0.0
    %428 = vmatprep.subr.mxu0 0.0
    %429 = vmatpush1.msra.mxu0 0.0
    %430 = vmatprep.subr.mxu0 0.0
    %431 = vmatpush1.msra.mxu0 0.0
    %432 = vmatprep.subr.mxu0 0.0
    %433 = vmatpush1.msra.mxu0 0.0
    %434 = vmatprep.subr.mxu0 0.0
    %435 = vmatpush1.msra.mxu0 0.0
    %436 = vmatprep.mubr.f32.mxu0 0.0
    %437 = vmatmul.mubr.f32.gmra.mrb[0].mxu0 %v370
    %v438 = vpop.f32.mrb[0].mxu0
    %v439 = vadd.f32 %v368, %v438
    %v440 = vpop.f32.mrb[0].mxu0
    %441 = vdwg.mxu0
    %v442 = vld [vmem:[%s3 + $0x6] sm:$0x1]
    %v443 = vld [vmem:[%s3 + $0x7] sm:$0x1]
    %v444 = vld [vmem:[%s3 + $0x8] sm:$0x1]
    %vm445 = vcmask 130048
    %v446 = vsel %vm445, %v439, 0.0
    %v447 = vrot.slane %v446, 4
    %v448 = vadd.f32 %v446, %v447
    %v449 = vrot.slane %v448, 2
    %v450 = vadd.f32 %v448, %v449
    %v451 = vrot.slane %v450, 1
    %v452 = vadd.f32 %v450, %v451
    %v453 = vmul.f32 %v452, %v209
    %v454 = vmul.f32 %v439, %v439
    %v455 = vsel %vm445, %v454, 0.0
    %v456 = vrot.slane %v455, 4
    %v457 = vadd.f32 %v455, %v456
    %v458 = vrot.slane %v457, 2
    %v459 = vadd.f32 %v457, %v458
    %v460 = vrot.slane %v459, 1
    %v461 = vadd.f32 %v459, %v460
    %v462 = vmul.f32 %v461, %v209
    %v463 = vmul.f32 %v453, %v453
    %v464 = vsub.f32 %v462, %v463
    %v465 = vmax.f32 %v464, 0.0
    %v466 = vadd.f32 %v465, 1e-05
    %v467 = vrsqrt.pop %v466
    %v468 = vmul.f32 %v442, %v467
    %v469 = vmul.f32 %v453, %v468
    %v470 = vsub.f32 %v443, %v469
    %v471 = vlaneseq
    %v472 = vshrl.u32 %v471, 7
    %v473 = vsub.s32 0, %v472
    %v474 = vrot.slane %v468, %v473
    %v475 = vmul.f32 %v439, %v474
    %v476 = vlaneseq
    %v477 = vshrl.u32 %v476, 7
    %v478 = vsub.s32 0, %v477
    %v479 = vrot.slane %v470, %v478
    %v480 = vadd.f32 %v475, %v479
    %v481 = vmax.f32 %v480, 0.0
    %v482 = vld [vmem:[%s4 + $0x30] sm:$0x1]
    %484 = vset.pattern.permute.xlu0 0
    %485 = vperm.xlu0 %484, %v444
    %v486 = vpop.permute.xlu0 %485
    %v489 = vsel %vm445, %v482, 0
    %v492 = vsel %vm445, %v481, 0
    %494 = vmatprep.subr.mxu0 0.0
    %495 = vmatpush1.xpose.msra.mxu0 %v492
    %496 = vmatprep.subr.mxu0 0.0
    %497 = vmatpush1.xpose.msra.mxu0 0.0
    %498 = vmatprep.subr.mxu0 0.0
    %499 = vmatpush1.xpose.msra.mxu0 0.0
    %500 = vmatprep.subr.mxu0 0.0
    %501 = vmatpush1.xpose.msra.mxu0 0.0
    %502 = vmatprep.subr.mxu0 0.0
    %503 = vmatpush1.xpose.msra.mxu0 0.0
    %504 = vmatprep.subr.mxu0 0.0
    %505 = vmatpush1.xpose.msra.mxu0 0.0
    %506 = vmatprep.subr.mxu0 0.0
    %507 = vmatpush1.xpose.msra.mxu0 0.0
    %508 = vmatprep.subr.mxu0 0.0
    %509 = vmatpush1.xpose.msra.mxu0 0.0
    %510 = vmatprep.subr.mxu0 0.0
    %511 = vmatpush1.xpose.msra.mxu0 0.0
    %512 = vmatprep.subr.mxu0 0.0
    %513 = vmatpush1.xpose.msra.mxu0 0.0
    %514 = vmatprep.subr.mxu0 0.0
    %515 = vmatpush1.xpose.msra.mxu0 0.0
    %516 = vmatprep.subr.mxu0 0.0
    %517 = vmatpush1.xpose.msra.mxu0 0.0
    %518 = vmatprep.subr.mxu0 0.0
    %519 = vmatpush1.xpose.msra.mxu0 0.0
    %520 = vmatprep.subr.mxu0 0.0
    %521 = vmatpush1.xpose.msra.mxu0 0.0
    %522 = vmatprep.subr.mxu0 0.0
    %523 = vmatpush1.xpose.msra.mxu0 0.0
    %524 = vmatprep.subr.mxu0 0.0
    %525 = vmatpush1.xpose.msra.mxu0 0.0
    %526 = vmatprep.subr.mxu0 0.0
    %527 = vmatpush1.xpose.msra.mxu0 0.0
    %528 = vmatprep.subr.mxu0 0.0
    %529 = vmatpush1.xpose.msra.mxu0 0.0
    %530 = vmatprep.subr.mxu0 0.0
    %531 = vmatpush1.xpose.msra.mxu0 0.0
    %532 = vmatprep.subr.mxu0 0.0
    %533 = vmatpush1.xpose.msra.mxu0 0.0
    %534 = vmatprep.subr.mxu0 0.0
    %535 = vmatpush1.xpose.msra.mxu0 0.0
    %536 = vmatprep.subr.mxu0 0.0
    %537 = vmatpush1.xpose.msra.mxu0 0.0
    %538 = vmatprep.subr.mxu0 0.0
    %539 = vmatpush1.xpose.msra.mxu0 0.0
    %540 = vmatprep.subr.mxu0 0.0
    %541 = vmatpush1.xpose.msra.mxu0 0.0
    %542 = vmatprep.subr.mxu0 0.0
    %543 = vmatpush1.xpose.msra.mxu0 0.0
    %544 = vmatprep.subr.mxu0 0.0
    %545 = vmatpush1.xpose.msra.mxu0 0.0
    %546 = vmatprep.subr.mxu0 0.0
    %547 = vmatpush1.xpose.msra.mxu0 0.0
    %548 = vmatprep.subr.mxu0 0.0
    %549 = vmatpush1.xpose.msra.mxu0 0.0
    %550 = vmatprep.subr.mxu0 0.0
    %551 = vmatpush1.xpose.msra.mxu0 0.0
    %552 = vmatprep.subr.mxu0 0.0
    %553 = vmatpush1.xpose.msra.mxu0 0.0
    %554 = vmatprep.subr.mxu0 0.0
    %555 = vmatpush1.xpose.msra.mxu0 0.0
    %556 = vmatprep.subr.mxu0 0.0
    %557 = vmatpush1.xpose.msra.mxu0 0.0
    %558 = vmatprep.mubr.f32.mxu0 0.0
    %559 = vmatmul.mubr.f32.gmra.mrb[0].mxu0 %v489
    %v560 = vpop.f32.mrb[0].mxu0
    %v561 = vadd.f32 %v486, %v560
    %v562 = vpop.f32.mrb[0].mxu0
    %563 = vdwg.mxu0
    %vm564 = vcmask 57344
    %565 = vst.msk [vmem:[#allocation2] sm:$0x1] %vm564, %v561
    // Predicated region
    $region22: #{forward.1} parent=1 // pred_check
      _
    $region23: #{forward.1} parent=1 // pred_check_branch
      %567 = sbr.rel (0) target = $region25
    $region24: #{forward.1} parent=1 // pred_region
      %s569 = ssub.s32 16, 16
      %570 = vsyncadd [#allocation3], %s569
      %s572 = sshll.u32 [#allocation2], 4
      %s573 = int_to_ptr.vmem [resolvable:$true] %s572
      %575 = dma.vmem_to_hbm [thread:$0]  %s573, 16, %s5, [#allocation3]
    $region25: #{forward.1} parent=1 // pred_fallthru
      _
    // Predicated region
    $region26: #{forward.1} parent=1 // pred_check
      _
    $region27: #{forward.1} parent=1 // pred_check_branch
      %577 = sbr.rel (0) target = $region29
    $region28: #{forward.1} parent=1 // pred_region
      %578 = dma.done [#allocation3], 16
    $region29: #{forward.1} parent=1 // pred_fallthru
      _
    %579 = vsyncpa [#allocation3], 1

</llo_original>
